<compile_context>
chip_gen: v7x
topology: tpu7x:2x2x1
jax: 0.10.0
libtpu: 0.0.40
codegen_flags: <defaults>
</compile_context>

<pallas_src>
import jax
import jax.numpy as jnp
from jax.experimental import pallas as pl
from jax.experimental.pallas import tpu as pltpu

_LANES = 128  # vreg lane width; keep the packed buffer a multiple of this


def _packed_copy_kernel(src_ref, dst_ref, sem):
    # Single direct HBM->HBM DMA of the packed, lane-aligned buffer.
    # No VMEM staging and no vreg load/store work.
    cp = pltpu.make_async_copy(src_ref, dst_ref, sem)
    cp.start()
    cp.wait()


def _pallas_passthrough(packed):
    """One pallas_call: copy the packed (rows, 128) buffer HBM->HBM."""
    return pl.pallas_call(
        _packed_copy_kernel,
        out_shape=jax.ShapeDtypeStruct(packed.shape, packed.dtype),
        in_specs=[pl.BlockSpec(memory_space=pl.ANY)],
        out_specs=pl.BlockSpec(memory_space=pl.ANY),
        scratch_shapes=[pltpu.SemaphoreType.DMA(())],
    )(packed)


def _torch_squeeze(a, dim=None):
    """torch.squeeze semantics: squeezing a non-size-1 dim is a no-op."""
    if dim is None:
        return jnp.squeeze(a)
    if a.shape[dim] == 1:
        return jnp.squeeze(a, axis=dim)
    return a


def model_forward(x, y, z):
    # Metadata-only squeezes (match torch.squeeze semantics exactly).
    x_sq = _torch_squeeze(x, 1)
    y_sq = _torch_squeeze(y)
    z_sq = _torch_squeeze(z, 4)
    outs = (x_sq, y_sq, z_sq)

    # Pack all three results into ONE lane-dense buffer (all inputs are the
    # same dtype in this test; the pack/unpack reshapes are metadata-only,
    # the concat/pad/slice are trivial at these sizes).
    flats = [a.reshape(-1) for a in outs]
    sizes = [f.shape[0] for f in flats]
    total = sum(sizes)
    pad = (-total) % _LANES
    packed = jnp.concatenate(flats)
    if pad:
        packed = jnp.pad(packed, (0, pad))
    packed = packed.reshape(-1, _LANES)  # 128-lane-aligned slab

    # Single Pallas HBM->HBM copy (the only kernel in the model).
    copied = _pallas_passthrough(packed).reshape(-1)

    # Slice the three results back out and restore squeezed shapes.
    results = []
    off = 0
    for a, n in zip(outs, sizes):
        results.append(copied[off:off + n].reshape(a.shape))
        off += n
    return tuple(results)


if __name__ == "__main__":
    key = jax.random.PRNGKey(0)
    kx, ky, kz = jax.random.split(key, 3)

    # Small shapes consistent with the squeeze semantics:
    x = jax.random.normal(kx, (2, 1, 16), dtype=jnp.float32)       # squeeze dim 1 -> (2, 16)
    y = jax.random.normal(ky, (1, 4, 1, 8), dtype=jnp.float32)     # squeeze all   -> (4, 8)
    z = jax.random.normal(kz, (2, 3, 4, 8, 1), dtype=jnp.float32)  # squeeze dim 4 -> (2, 3, 4, 8)

    fwd = jax.jit(model_forward)
    x_out, y_out, z_out = jax.block_until_ready(fwd(x, y, z))

    # Verify against pure-JAX reference semantics.
    assert x_out.shape == (2, 16)
    assert y_out.shape == (4, 8)
    assert z_out.shape == (2, 3, 4, 8)
    assert jnp.array_equal(x_out, jnp.squeeze(x, axis=1))
    assert jnp.array_equal(y_out, jnp.squeeze(y))
    assert jnp.array_equal(z_out, jnp.squeeze(z, axis=4))

    print("KERNEL_OK")
</pallas_src>

<mosaic_0001>
module attributes {stable_mosaic.version = 11 : i64} {
  func.func @_packed_copy_kernel(%arg0: memref<2x128xf32, #tpu.memory_space<any>>, %arg1: memref<2x128xf32, #tpu.memory_space<any>>, %arg2: memref<!tpu.dma_semaphore, #tpu.memory_space<semaphore_mem>>) attributes {dimension_semantics = [], scalar_prefetch = 0 : i64, scratch_operands = 1 : i64, tpu.core_type = #tpu.core_type<tc>} {
    tpu.enqueue_dma source(%arg0 : memref<2x128xf32, #tpu.memory_space<any>>) target(%arg1 : memref<2x128xf32, #tpu.memory_space<any>>) target_semaphore(%arg2 : memref<!tpu.dma_semaphore, #tpu.memory_space<semaphore_mem>>)
    tpu.wait_dma2 semaphore(%arg2 : memref<!tpu.dma_semaphore, #tpu.memory_space<semaphore_mem>>) src(%arg0 : memref<2x128xf32, #tpu.memory_space<any>>) dst(%arg1 : memref<2x128xf32, #tpu.memory_space<any>>)
    return
  }
}

</mosaic_0001>

<llo_original>
// kernel: squeeze.5
$region0: #{squeeze.5}
  %s0 = inlined_call_operand.vmem [shape: f32[2,3,4,8], index: 0, kind: input, shape index: {}]
  %s1 = inlined_call_operand.vmem [shape: f32[192], index: 1, kind: output, shape index: {}]
  $region1: #{squeeze.5} parent=0
    #allocation0 [shape = 'u8[4096]{0}', space=vmem, size = 0x1000, scoped, tag = 'scoped mem for output reshape']
    #allocation1 [shape = 'u8[24576]{0}', space=vmem, size = 0x6000, scoped, tag = 'scoped mem for input reshape']
    %s3 = sshllo.u32 0, 4
    %s4 = smul.addr 4, 5
    %s5 = scalar_lea.vmem %s0, %s4
    %v6 = vld [vmem:[%s5] sm:%s3]
    %s7 = scalar_lea.vmem [#allocation1], 40
    %8 = vst [vmem:[%s7] sm:%s3] %v6
    %s9 = smul.addr 4, 4
    %s10 = scalar_lea.vmem %s0, %s9
    %v11 = vld [vmem:[%s10] sm:%s3]
    %s12 = scalar_lea.vmem [#allocation1], 32
    %13 = vst [vmem:[%s12] sm:%s3] %v11
    %s14 = smul.addr 4, 3
    %s15 = scalar_lea.vmem %s0, %s14
    %v16 = vld [vmem:[%s15] sm:%s3]
    %s17 = scalar_lea.vmem [#allocation1], 24
    %18 = vst [vmem:[%s17] sm:%s3] %v16
    %s19 = smul.addr 4, 2
    %s20 = scalar_lea.vmem %s0, %s19
    %v21 = vld [vmem:[%s20] sm:%s3]
    %s22 = scalar_lea.vmem [#allocation1], 16
    %23 = vst [vmem:[%s22] sm:%s3] %v21
    %s24 = scalar_lea.vmem %s0, 4
    %v25 = vld [vmem:[%s24] sm:%s3]
    %s26 = scalar_lea.vmem [#allocation1], 8
    %27 = vst [vmem:[%s26] sm:%s3] %v25
    %v28 = vld [vmem:[%s0] sm:%s3]
    %29 = vst [vmem:[#allocation1] sm:%s3] %v28
    %v30 = vld [vmem:[#allocation1] sm:$0x1]
    %s31 = scalar_lea.vmem [#allocation1], 31
    %v32 = vld [vmem:[%s31] sm:$0x2]
    %vm33 = vcmask 1041409
    %v34 = vsel %vm33, %v32, %v30
    %vm35 = vcmask 64512
    %36 = vst.msk [vmem:[#allocation0] sm:$0x3] %vm35, %v34
    %s37 = scalar_lea.vmem [#allocation1], 27
    %v38 = vld [vmem:[%s37] sm:$0x1]
    %39 = vrot.lane.b32.xlu0 %v38, 120
    %v40 = vpop.permute.xlu0 %39
    %vm41 = vcmask 1048512
    %42 = vst.msk [vmem:[#allocation0] sm:$0x1] %vm41, %v40
    %s43 = scalar_lea.vmem [#allocation1], 26
    %v44 = vld [vmem:[%s43] sm:$0x1]
    %45 = vrot.lane.b32.xlu0 %v44, 112
    %v46 = vpop.permute.xlu0 %45
    %vm47 = vcmask 982912
    %48 = vst.msk [vmem:[#allocation0] sm:$0x1] %vm47, %v46
    %s49 = scalar_lea.vmem [#allocation1], 25
    %v50 = vld [vmem:[%s49] sm:$0x1]
    %51 = vrot.lane.b32.xlu0 %v50, 104
    %v52 = vpop.permute.xlu0 %51
    %vm53 = vcmask 917312
    %54 = vst.msk [vmem:[#allocation0] sm:$0x1] %vm53, %v52
    %s55 = scalar_lea.vmem [#allocation1], 24
    %v56 = vld [vmem:[%s55] sm:$0x1]
    %57 = vrot.lane.b32.xlu0 %v56, 96
    %v58 = vpop.permute.xlu0 %57
    %vm59 = vcmask 851712
    %60 = vst.msk [vmem:[#allocation0] sm:$0x1] %vm59, %v58
    %s61 = scalar_lea.vmem [#allocation1], 19
    %v62 = vld [vmem:[%s61] sm:$0x1]
    %63 = vrot.lane.b32.xlu0 %v62, 88
    %v64 = vpop.permute.xlu0 %63
    %vm65 = vcmask 786112
    %66 = vst.msk [vmem:[#allocation0] sm:$0x1] %vm65, %v64
    %s67 = scalar_lea.vmem [#allocation1], 18
    %v68 = vld [vmem:[%s67] sm:$0x1]
    %69 = vrot.lane.b32.xlu0 %v68, 80
    %v70 = vpop.permute.xlu0 %69
    %vm71 = vcmask 720512
    %72 = vst.msk [vmem:[#allocation0] sm:$0x1] %vm71, %v70
    %s73 = scalar_lea.vmem [#allocation1], 17
    %v74 = vld [vmem:[%s73] sm:$0x1]
    %75 = vrot.lane.b32.xlu0 %v74, 72
    %v76 = vpop.permute.xlu0 %75
    %vm77 = vcmask 654912
    %78 = vst.msk [vmem:[#allocation0] sm:$0x1] %vm77, %v76
    %s79 = scalar_lea.vmem [#allocation1], 16
    %v80 = vld [vmem:[%s79] sm:$0x1]
    %81 = vrot.lane.b32.xlu0 %v80, 64
    %v82 = vpop.permute.xlu0 %81
    %vm83 = vcmask 589312
    %84 = vst.msk [vmem:[#allocation0] sm:$0x1] %vm83, %v82
    %s85 = scalar_lea.vmem [#allocation1], 11
    %v86 = vld [vmem:[%s85] sm:$0x1]
    %s87 = scalar_lea.vmem [#allocation1], 42
    %v88 = vld [vmem:[%s87] sm:$0x2]
    %vm89 = vcmask 1041409
    %v90 = vsel %vm89, %v88, %v86
    %91 = vrot.lane.b32.xlu0 %v90, 56
    %v92 = vpop.permute.xlu0 %91
    %vm93 = vcmask 523712
    %94 = vst.msk [vmem:[#allocation0] sm:$0x3] %vm93, %v92
    %s95 = scalar_lea.vmem [#allocation1], 10
    %v96 = vld [vmem:[%s95] sm:$0x1]
    %s97 = scalar_lea.vmem [#allocation1], 41
    %v98 = vld [vmem:[%s97] sm:$0x2]
    %vm99 = vcmask 1041409
    %v100 = vsel %vm99, %v98, %v96
    %101 = vrot.lane.b32.xlu0 %v100, 48
    %v102 = vpop.permute.xlu0 %101
    %vm103 = vcmask 458112
    %104 = vst.msk [vmem:[#allocation0] sm:$0x3] %vm103, %v102
    %s105 = scalar_lea.vmem [#allocation1], 9
    %v106 = vld [vmem:[%s105] sm:$0x1]
    %s107 = scalar_lea.vmem [#allocation1], 40
    %v108 = vld [vmem:[%s107] sm:$0x2]
    %vm109 = vcmask 1041409
    %v110 = vsel %vm109, %v108, %v106
    %111 = vrot.lane.b32.xlu0 %v110, 40
    %v112 = vpop.permute.xlu0 %111
    %vm113 = vcmask 392512
    %114 = vst.msk [vmem:[#allocation0] sm:$0x3] %vm113, %v112
    %s115 = scalar_lea.vmem [#allocation1], 8
    %v116 = vld [vmem:[%s115] sm:$0x1]
    %s117 = scalar_lea.vmem [#allocation1], 39
    %v118 = vld [vmem:[%s117] sm:$0x2]
    %vm119 = vcmask 1041409
    %v120 = vsel %vm119, %v118, %v116
    %121 = vrot.lane.b32.xlu0 %v120, 32
    %v122 = vpop.permute.xlu0 %121
    %vm123 = vcmask 326912
    %124 = vst.msk [vmem:[#allocation0] sm:$0x3] %vm123, %v122
    %s125 = scalar_lea.vmem [#allocation1], 3
    %v126 = vld [vmem:[%s125] sm:$0x1]
    %s127 = scalar_lea.vmem [#allocation1], 34
    %v128 = vld [vmem:[%s127] sm:$0x2]
    %vm129 = vcmask 1041409
    %v130 = vsel %vm129, %v128, %v126
    %131 = vrot.lane.b32.xlu0 %v130, 24
    %v132 = vpop.permute.xlu0 %131
    %vm133 = vcmask 261312
    %134 = vst.msk [vmem:[#allocation0] sm:$0x3] %vm133, %v132
    %s135 = scalar_lea.vmem [#allocation1], 2
    %v136 = vld [vmem:[%s135] sm:$0x1]
    %s137 = scalar_lea.vmem [#allocation1], 33
    %v138 = vld [vmem:[%s137] sm:$0x2]
    %vm139 = vcmask 1041409
    %v140 = vsel %vm139, %v138, %v136
    %141 = vrot.lane.b32.xlu0 %v140, 16
    %v142 = vpop.permute.xlu0 %141
    %vm143 = vcmask 195712
    %144 = vst.msk [vmem:[#allocation0] sm:$0x3] %vm143, %v142
    %s145 = scalar_lea.vmem [#allocation1], 1
    %v146 = vld [vmem:[%s145] sm:$0x1]
    %s147 = scalar_lea.vmem [#allocation1], 32
    %v148 = vld [vmem:[%s147] sm:$0x2]
    %vm149 = vcmask 1041409
    %v150 = vsel %vm149, %v148, %v146
    %151 = vrot.lane.b32.xlu0 %v150, 8
    %v152 = vpop.permute.xlu0 %151
    %vm153 = vcmask 130112
    %154 = vst.msk [vmem:[#allocation0] sm:$0x3] %vm153, %v152
    %s156 = sshllo.u32 0, 2
    %v158 = vld [vmem:[#allocation0] sm:%s156]
    %s159 = sshllo.u32 0, 2
    %160 = vst [vmem:[%s1] sm:%s159] %v158

// kernel: squeeze.4
$region0: #{squeeze.4}
  %s0 = inlined_call_operand.vmem [shape: f32[4,8], index: 0, kind: input, shape index: {}]
  %s1 = inlined_call_operand.vmem [shape: f32[32], index: 1, kind: output, shape index: {}]
  $region1: #{squeeze.4} parent=0
    #allocation0 [shape = 'u8[4096]{0}', space=vmem, size = 0x1000, scoped, tag = 'scoped mem for output reshape']
    #allocation1 [shape = 'u8[4096]{0}', space=vmem, size = 0x1000, scoped, tag = 'scoped mem for input reshape']
    %s3 = sshllo.u32 0, 4
    %v4 = vld [vmem:[%s0] sm:%s3]
    %5 = vst [vmem:[#allocation1] sm:%s3] %v4
    %v6 = vld [vmem:[#allocation1] sm:$0x1]
    %vm7 = vcmask 64512
    %8 = vst.msk [vmem:[#allocation0] sm:$0x1] %vm7, %v6
    %s9 = scalar_lea.vmem [#allocation1], 3
    %v10 = vld [vmem:[%s9] sm:$0x1]
    %11 = vrot.lane.b32.xlu0 %v10, 24
    %v12 = vpop.permute.xlu0 %11
    %vm13 = vcmask 261312
    %14 = vst.msk [vmem:[#allocation0] sm:$0x1] %vm13, %v12
    %s15 = scalar_lea.vmem [#allocation1], 2
    %v16 = vld [vmem:[%s15] sm:$0x1]
    %17 = vrot.lane.b32.xlu0 %v16, 16
    %v18 = vpop.permute.xlu0 %17
    %vm19 = vcmask 195712
    %20 = vst.msk [vmem:[#allocation0] sm:$0x1] %vm19, %v18
    %s21 = scalar_lea.vmem [#allocation1], 1
    %v22 = vld [vmem:[%s21] sm:$0x1]
    %23 = vrot.lane.b32.xlu0 %v22, 8
    %v24 = vpop.permute.xlu0 %23
    %vm25 = vcmask 130112
    %26 = vst.msk [vmem:[#allocation0] sm:$0x1] %vm25, %v24
    %s28 = sshllo.u32 0, 1
    %v30 = vld [vmem:[#allocation0] sm:%s28]
    %s31 = sshllo.u32 0, 1
    %32 = vst [vmem:[%s1] sm:%s31] %v30

// kernel: squeeze.3
$region0: #{squeeze.3}
  %s0 = inlined_call_operand.vmem [shape: f32[2,16], index: 0, kind: input, shape index: {}]
  %s1 = inlined_call_operand.vmem [shape: f32[32], index: 1, kind: output, shape index: {}]
  $region1: #{squeeze.3} parent=0
    #allocation0 [shape = 'u8[4096]{0}', space=vmem, size = 0x1000, scoped, tag = 'scoped mem for output reshape']
    #allocation1 [shape = 'u8[4096]{0}', space=vmem, size = 0x1000, scoped, tag = 'scoped mem for input reshape']
    %s3 = sshllo.u32 0, 2
    %v4 = vld [vmem:[%s0] sm:%s3]
    %5 = vst [vmem:[#allocation1] sm:%s3] %v4
    %v6 = vld [vmem:[#allocation1] sm:$0x1]
    %vm7 = vcmask 130048
    %8 = vst.msk [vmem:[#allocation0] sm:$0x1] %vm7, %v6
    %s9 = scalar_lea.vmem [#allocation1], 1
    %v10 = vld [vmem:[%s9] sm:$0x1]
    %11 = vrot.lane.b32.xlu0 %v10, 16
    %v12 = vpop.permute.xlu0 %11
    %vm13 = vcmask 261248
    %14 = vst.msk [vmem:[#allocation0] sm:$0x1] %vm13, %v12
    %s16 = sshllo.u32 0, 1
    %v18 = vld [vmem:[#allocation0] sm:%s16]
    %s19 = sshllo.u32 0, 1
    %20 = vst [vmem:[%s1] sm:%s19] %v18

// kernel: model_forward.1
$region0: #{model_forward.1}
  #allocation0 [shape = 'u32[]', space=smem, size = 0x4, offset = 0x4, fixed_abs, tag = 'smem constant byte address 0x4 - core index']
  #allocation1 [shape = 'u32[144,128]{1,0:T(1,128)}', space=vmem, size = 0x12000, scoped, tag = 'internal scratch']
  #allocation2 [shape = 's32[1]{0}', space=sflag, size = 0x4, scoped, tag = 'scratch operand']
  #allocation3 [shape = 's32[]', space=sflag, size = 0x4, offset = 0, fixed_abs, tag = 'sflag constant byte address 0x0 - dummy sync flag']
  %s0 = inlined_call_operand.vmem [shape: f32[2,128], index: 0, kind: input, shape index: {}]
  %s1 = inlined_call_operand.vmem [shape: f32[2,128], index: 1, kind: output, shape index: {}]
  %s2 = sld [smem:[#allocation0]]
  $region32: #{model_forward.1} parent=0
    _
  %s4 = ssub.s32 1, %s2
  %s5 = scalar_select 0, %s4, %s2
  %p7 = scmp.lt.u32.totalorder 2, 8
  %p8 = pneg %p7
  // Predicated region
  $region2: #{model_forward.1} parent=0 // pred_check
    _
  $region3: #{model_forward.1} parent=0 // pred_check_branch
    %10 = sbr.rel (%p7) target = $region5
  $region4: #{model_forward.1} parent=0 // pred_region
    %s25 = sand.u32 2, 7
    %p26 = scmp.eq.s32.totalorder %s25, 0
    %p27 = pneg %p26
    // Predicated region
    $region17: #{model_forward.1} parent=4 // pred_check
      _
    $region18: #{model_forward.1} parent=4 // pred_check_branch
      %29 = sbr.rel (%p26) target = $region20
    $region19: #{model_forward.1} parent=4 // pred_region
      %s30 = sand.u32 2, 7
      %s31 = ssub.s32 2, %s30
      %s32 = scalar_lea.vmem %s0, %s31
      %s33 = ssub.s32 2, %s30
      %s34 = scalar_lea.vmem %s1, %s33
      %s35 = sshllo.u32 0, %s30
      loop: start=0, step=1, limit=1
      $region21: #{model_forward.1} parent=19 // loop_pre_header
        _
      $region22: #{model_forward.1} parent=19 // loop_header
        %s37 = sphi 0, %s41
        %p38 = scmp.ge.s32.totalorder %s37, 1
        %s42 = sphi %s32, %s32
        %s43 = sphi %s34, %s34
      $region23: #{model_forward.1} parent=19 // loop_header_branch
        %40 = sbr.rel (%p38) target = $region27
      $region24: #{model_forward.1} parent=19 // loop_body
        %v44 = vld [vmem:[%s42] sm:%s35]
        %45 = vst [vmem:[%s43] sm:%s35] %v44
      $region25: #{model_forward.1} parent=19 // loop_footer
        %s41 = sadd.s32 1, %s37
      $region26: #{model_forward.1} parent=19 // loop_footer_branch
        %36 = sbr.rel target = $region22
      $region27: #{model_forward.1} parent=19 // loop_exit
        _
    $region20: #{model_forward.1} parent=4 // pred_fallthru
      _
  $region5: #{model_forward.1} parent=0 // pred_fallthru
    _
  // Predicated region
  $region6: #{model_forward.1} parent=0 // pred_check
    %p11 = pneg %p7
  $region7: #{model_forward.1} parent=0 // pred_check_branch
    %13 = sbr.rel (%p11) target = $region9
  $region8: #{model_forward.1} parent=0 // pred_region
    %s14 = sshllo.u32 0, 2
    loop: start=0, step=1, limit=1
    $region10: #{model_forward.1} parent=8 // loop_pre_header
      _
    $region11: #{model_forward.1} parent=8 // loop_header
      %s16 = sphi 0, %s20
      %p17 = scmp.ge.s32.totalorder %s16, 1
      %s21 = sphi %s0, %s0
      %s22 = sphi %s1, %s1
    $region12: #{model_forward.1} parent=8 // loop_header_branch
      %19 = sbr.rel (%p17) target = $region16
    $region13: #{model_forward.1} parent=8 // loop_body
      %v23 = vld [vmem:[%s21] sm:%s14]
      %24 = vst [vmem:[%s22] sm:%s14] %v23
    $region14: #{model_forward.1} parent=8 // loop_footer
      %s20 = sadd.s32 1, %s16
    $region15: #{model_forward.1} parent=8 // loop_footer_branch
      %15 = sbr.rel target = $region11
    $region16: #{model_forward.1} parent=8 // loop_exit
      _
  $region9: #{model_forward.1} parent=0 // pred_fallthru
    _
  // Predicated region
  $region28: #{model_forward.1} parent=0 // pred_check
    _
  $region29: #{model_forward.1} parent=0 // pred_check_branch
    %48 = sbr.rel (0) target = $region31
  $region30: #{model_forward.1} parent=0 // pred_region
    %49 = vsyncadd [#allocation2], 32
  $region31: #{model_forward.1} parent=0 // pred_fallthru
    _
  %s50 = smul.u32 2, 1
  %s51 = sshll.u32 %s50, 4
  %52 = dma.done [#allocation2], %s51
  %53 = vsyncmov [#allocation2]
  %s54 = vpop.sfrf %53
  %p55 = scmp.eq.s32.totalorder %s54, 0
  %p56 = pneg %p55
  %58 = shalt.err (%p56)

</llo_original>
